<compile_context>
chip_gen: v6e
topology: v6e:2x2x1
jax: 0.10.0
libtpu: 0.0.40
codegen_flags: <defaults>
</compile_context>

<pallas_src>
import jax
import jax.numpy as jnp
from jax.experimental import pallas as pl
from jax.experimental.pallas import tpu as pltpu

NEG_SLOPE = 0.01  # F.leaky_relu default

H1, H2 = 200, 100          # true hidden sizes
H1_PAD, H2_PAD = 256, 128  # lane-aligned padded hidden sizes


def _leaky_relu(x):
    return jnp.where(x > 0, x, NEG_SLOPE * x)


def bayesnn_kernel(x_ref, w1_ref, b1_ref, w2_ref, b2_ref, w3_ref, b3_ref, o_ref):
    x = x_ref[...]                                               # [1, tb]
    # Layer 1: contraction length is 1 -> outer product on the VPU, skip MXU.
    h = _leaky_relu(w1_ref[...] * x + b1_ref[...])               # [256, tb]
    # Layer 2: [128, 256] @ [256, tb] on the MXU.
    h = jnp.dot(w2_ref[...], h, preferred_element_type=jnp.float32)
    h = _leaky_relu(h + b2_ref[...])                             # [128, tb]
    # Layer 3: [1, 128] @ [128, tb] + scalar bias (SMEM).
    o = jnp.dot(w3_ref[...], h, preferred_element_type=jnp.float32)
    o_ref[...] = (o + b3_ref[0]).astype(o_ref.dtype)             # [1, tb]


def bayesnn_forward(x, params, *, tile_b=256):
    """x: [N, 1] float32.  params: PyTorch-layout sampled weights/biases."""
    N = x.shape[0]
    n_pad = -N % tile_b
    # Put batch on the lane axis: [1, Np] (lane-dense input AND output).
    xt = jnp.pad(x, ((0, n_pad), (0, 0))).T
    Np = N + n_pad

    # Zero-pad hidden dims to 128-multiples once on the wrapper side; padded
    # rows/cols are zero so they contribute nothing to the result.
    w1 = jnp.pad(params["w1"], ((0, H1_PAD - H1), (0, 0)))                   # [256, 1]
    b1 = jnp.pad(params["b1"], (0, H1_PAD - H1)).reshape(H1_PAD, 1)          # [256, 1]
    w2 = jnp.pad(params["w2"], ((0, H2_PAD - H2), (0, H1_PAD - H1)))         # [128, 256]
    b2 = jnp.pad(params["b2"], (0, H2_PAD - H2)).reshape(H2_PAD, 1)          # [128, 1]
    w3 = jnp.pad(params["w3"], ((0, 0), (0, H2_PAD - H2)))                   # [1, 128]
    b3 = params["b3"].reshape(1).astype(jnp.float32)                         # scalar (SMEM)

    grid = (Np // tile_b,)

    def rep(shape):
        # full-array block, replicated across the batch grid
        return pl.BlockSpec(shape, lambda i: tuple(0 for _ in shape))

    out_t = pl.pallas_call(
        bayesnn_kernel,
        out_shape=jax.ShapeDtypeStruct((1, Np), jnp.float32),
        grid_spec=pl.GridSpec(
            grid=grid,
            in_specs=[
                pl.BlockSpec((1, tile_b), lambda i: (0, i)),            # x tile
                rep(w1.shape), rep(b1.shape),
                rep(w2.shape), rep(b2.shape),
                rep(w3.shape),
                pl.BlockSpec(memory_space=pltpu.MemorySpace.SMEM),      # b3 scalar
            ],
            out_specs=pl.BlockSpec((1, tile_b), lambda i: (0, i)),
        ),
        compiler_params=pltpu.CompilerParams(
            dimension_semantics=("parallel",)),  # batch axis shards across TCs on v7x
    )(xt, w1, b1, w2, b2, w3, b3)

    return out_t[:, :N].T  # back to [N, 1]


def make_bayes_params(key):
    """Deterministic BayesLinear params (PyTorch [out, in] layout) and one draw:
       W = W_mu + softplus(W_rho) * eps_W,  b = b_mu + softplus(b_rho) * eps_b."""
    dims = [(200, 1), (100, 200), (1, 100)]   # (out_features, in_features)
    params = {}
    for li, (fout, fin) in enumerate(dims, start=1):
        key, k_mu_w, k_eps_w, k_mu_b, k_eps_b = jax.random.split(key, 5)
        w_mu = 0.1 * jax.random.normal(k_mu_w, (fout, fin), jnp.float32)
        w_rho = jnp.full((fout, fin), -3.0, jnp.float32)
        b_mu = 0.1 * jax.random.normal(k_mu_b, (fout,), jnp.float32)
        b_rho = jnp.full((fout,), -3.0, jnp.float32)
        eps_w = jax.random.normal(k_eps_w, (fout, fin), jnp.float32)
        eps_b = jax.random.normal(k_eps_b, (fout,), jnp.float32)
        params[f"w{li}"] = w_mu + jnp.log1p(jnp.exp(w_rho)) * eps_w
        params[f"b{li}"] = b_mu + jnp.log1p(jnp.exp(b_rho)) * eps_b
    return params


def reference_forward(x, params):
    h = _leaky_relu(x @ params["w1"].T + params["b1"])
    h = _leaky_relu(h @ params["w2"].T + params["b2"])
    return h @ params["w3"].T + params["b3"]


if __name__ == "__main__":
    key = jax.random.PRNGKey(0)
    key, kx = jax.random.split(key)
    N = 512                                            # 2 lane-dense tiles of 256
    x = jax.random.normal(kx, (N, 1), jnp.float32)     # in_features = 1

    params = make_bayes_params(key)

    out = bayesnn_forward(x, params, tile_b=256)
    out = jax.block_until_ready(out)

    ref = reference_forward(x, params)
    assert out.shape == (N, 1)
    assert jnp.allclose(out, ref, atol=1e-4, rtol=1e-4), "mismatch vs reference"

    print("KERNEL_OK")
</pallas_src>

<mosaic_0001>
module attributes {stable_mosaic.version = 11 : i64} {
  func.func @bayesnn_kernel(%arg0: i32, %arg1: memref<1x256xf32, #tpu.memory_space<vmem>>, %arg2: memref<256x1xf32, #tpu.memory_space<vmem>>, %arg3: memref<256x1xf32, #tpu.memory_space<vmem>>, %arg4: memref<128x256xf32, #tpu.memory_space<vmem>>, %arg5: memref<128x1xf32, #tpu.memory_space<vmem>>, %arg6: memref<1x128xf32, #tpu.memory_space<vmem>>, %arg7: memref<1xf32, #tpu.memory_space<smem>>, %arg8: memref<1x256xf32, #tpu.memory_space<vmem>>) attributes {dimension_semantics = [#tpu.dimension_semantics<parallel>], iteration_bounds = array<i64: 2>, scalar_prefetch = 0 : i64, scratch_operands = 0 : i64, tpu.core_type = #tpu.core_type<tc>, window_params = [{transform_indices = @transform_0, window_bounds = array<i64: 1, 256>}, {pipeline_mode = #tpu.pipeline_mode<synchronous>, transform_indices = @transform_1, window_bounds = array<i64: 256, 1>}, {pipeline_mode = #tpu.pipeline_mode<synchronous>, transform_indices = @transform_2, window_bounds = array<i64: 256, 1>}, {pipeline_mode = #tpu.pipeline_mode<synchronous>, transform_indices = @transform_3, window_bounds = array<i64: 128, 256>}, {pipeline_mode = #tpu.pipeline_mode<synchronous>, transform_indices = @transform_4, window_bounds = array<i64: 128, 1>}, {pipeline_mode = #tpu.pipeline_mode<synchronous>, transform_indices = @transform_5, window_bounds = array<i64: 1, 128>}, {transform_indices = @transform_6, window_bounds = array<i64: 1>}, {transform_indices = @transform_7, window_bounds = array<i64: 1, 256>}]} {
    %c0 = arith.constant 0 : index
    %c0_0 = arith.constant 0 : index
    %0 = vector.load %arg1[%c0, %c0_0] : memref<1x256xf32, #tpu.memory_space<vmem>>, vector<1x256xf32>
    %c0_1 = arith.constant 0 : index
    %c0_2 = arith.constant 0 : index
    %1 = vector.load %arg2[%c0_1, %c0_2] : memref<256x1xf32, #tpu.memory_space<vmem>>, vector<256x1xf32>
    %2 = vector.broadcast %1 : vector<256x1xf32> to vector<256x256xf32>
    %3 = vector.broadcast %0 : vector<1x256xf32> to vector<256x256xf32>
    %4 = arith.mulf %2, %3 : vector<256x256xf32>
    %c0_3 = arith.constant 0 : index
    %c0_4 = arith.constant 0 : index
    %5 = vector.load %arg3[%c0_3, %c0_4] : memref<256x1xf32, #tpu.memory_space<vmem>>, vector<256x1xf32>
    %6 = vector.broadcast %5 : vector<256x1xf32> to vector<256x256xf32>
    %7 = arith.addf %4, %6 : vector<256x256xf32>
    %cst = arith.constant 0.000000e+00 : f32
    %8 = vector.broadcast %cst : f32 to vector<256x256xf32>
    %9 = arith.cmpf ogt, %7, %8 : vector<256x256xf32>
    %cst_5 = arith.constant 0.00999999977 : f32
    %10 = vector.broadcast %cst_5 : f32 to vector<256x256xf32>
    %11 = arith.mulf %10, %7 : vector<256x256xf32>
    %12 = arith.select %9, %7, %11 : vector<256x256xi1>, vector<256x256xf32>
    %c0_6 = arith.constant 0 : index
    %c0_7 = arith.constant 0 : index
    %13 = vector.load %arg4[%c0_6, %c0_7] : memref<128x256xf32, #tpu.memory_space<vmem>>, vector<128x256xf32>
    %cst_8 = arith.constant dense<0.000000e+00> : vector<128x256xf32>
    %14 = tpu.matmul %13, %12, %cst_8 {dimension_numbers = #tpu.dot_dimension_numbers<[1], [0], [0], [1], [0, 0, 1, 1], [], []>} : vector<128x256xf32>, vector<256x256xf32>, vector<128x256xf32> -> vector<128x256xf32>
    %c0_9 = arith.constant 0 : index
    %c0_10 = arith.constant 0 : index
    %15 = vector.load %arg5[%c0_9, %c0_10] : memref<128x1xf32, #tpu.memory_space<vmem>>, vector<128x1xf32>
    %16 = vector.broadcast %15 : vector<128x1xf32> to vector<128x256xf32>
    %17 = arith.addf %14, %16 : vector<128x256xf32>
    %cst_11 = arith.constant 0.000000e+00 : f32
    %18 = vector.broadcast %cst_11 : f32 to vector<128x256xf32>
    %19 = arith.cmpf ogt, %17, %18 : vector<128x256xf32>
    %cst_12 = arith.constant 0.00999999977 : f32
    %20 = vector.broadcast %cst_12 : f32 to vector<128x256xf32>
    %21 = arith.mulf %20, %17 : vector<128x256xf32>
    %22 = arith.select %19, %17, %21 : vector<128x256xi1>, vector<128x256xf32>
    %c0_13 = arith.constant 0 : index
    %c0_14 = arith.constant 0 : index
    %23 = vector.load %arg6[%c0_13, %c0_14] : memref<1x128xf32, #tpu.memory_space<vmem>>, vector<1x128xf32>
    %cst_15 = arith.constant dense<0.000000e+00> : vector<1x256xf32>
    %24 = tpu.matmul %23, %22, %cst_15 {dimension_numbers = #tpu.dot_dimension_numbers<[1], [0], [0], [1], [0, 0, 1, 1], [], []>} : vector<1x128xf32>, vector<128x256xf32>, vector<1x256xf32> -> vector<1x256xf32>
    %c0_16 = arith.constant 0 : index
    %25 = memref.load %arg7[%c0_16] : memref<1xf32, #tpu.memory_space<smem>>
    %26 = vector.broadcast %25 : f32 to vector<1x256xf32>
    %27 = arith.addf %24, %26 : vector<1x256xf32>
    %c0_17 = arith.constant 0 : index
    %c0_18 = arith.constant 0 : index
    %28 = vector.load %arg8[%c0_17, %c0_18] : memref<1x256xf32, #tpu.memory_space<vmem>>, vector<1x256xf32>
    tpu.vector_store %arg8[%c0_17, %c0_18], %27 {strides = array<i32>} : memref<1x256xf32, #tpu.memory_space<vmem>>, vector<1x256xf32>,
    return
  }
  func.func @transform_0(%arg0: i32) -> (i32, i32) {
    %c0_i32 = arith.constant 0 : i32
    %c0_i32_0 = arith.constant 0 : i32
    return %c0_i32, %arg0 : i32, i32
  }
  func.func @transform_1(%arg0: i32) -> (i32, i32) {
    %c0_i32 = arith.constant 0 : i32
    %c0_i32_0 = arith.constant 0 : i32
    %c0_i32_1 = arith.constant 0 : i32
    return %c0_i32, %c0_i32_0 : i32, i32
  }
  func.func @transform_2(%arg0: i32) -> (i32, i32) {
    %c0_i32 = arith.constant 0 : i32
    %c0_i32_0 = arith.constant 0 : i32
    %c0_i32_1 = arith.constant 0 : i32
    return %c0_i32, %c0_i32_0 : i32, i32
  }
  func.func @transform_3(%arg0: i32) -> (i32, i32) {
    %c0_i32 = arith.constant 0 : i32
    %c0_i32_0 = arith.constant 0 : i32
    %c0_i32_1 = arith.constant 0 : i32
    return %c0_i32, %c0_i32_0 : i32, i32
  }
  func.func @transform_4(%arg0: i32) -> (i32, i32) {
    %c0_i32 = arith.constant 0 : i32
    %c0_i32_0 = arith.constant 0 : i32
    %c0_i32_1 = arith.constant 0 : i32
    return %c0_i32, %c0_i32_0 : i32, i32
  }
  func.func @transform_5(%arg0: i32) -> (i32, i32) {
    %c0_i32 = arith.constant 0 : i32
    %c0_i32_0 = arith.constant 0 : i32
    %c0_i32_1 = arith.constant 0 : i32
    return %c0_i32, %c0_i32_0 : i32, i32
  }
  func.func @transform_6(%arg0: i32) -> i32 {
    %c0_i32 = arith.constant 0 : i32
    %c0_i32_0 = arith.constant 0 : i32
    return %c0_i32 : i32
  }
  func.func @transform_7(%arg0: i32) -> (i32, i32) {
    %c0_i32 = arith.constant 0 : i32
    %c0_i32_0 = arith.constant 0 : i32
    return %c0_i32, %arg0 : i32, i32
  }
}

</mosaic_0001>

<llo_original>
// kernel: tpu_custom_call.1
$region0: #{tpu_custom_call.1}
  #allocation0 [shape = 'u32[]', space=smem, size = 0x4, offset = 0x4, fixed_abs, tag = 'smem constant byte address 0x4 - core index']
  #allocation1 [shape = 'u32[144,128]{1,0:T(1,128)}', space=vmem, size = 0x12000, scoped, tag = 'internal scratch']
  #allocation2 [shape = 'f32[1]{0:T(128)S(6)}', space=smem, size = 0x200, scoped, tag = 'scoped memory for tpu_custom_call.1']
  %s0 = inlined_call_operand.vmem [shape: f32[1,512], index: 0, kind: input, shape index: {}]
  %s1 = inlined_call_operand.vmem [shape: f32[256,1], index: 1, kind: input, shape index: {}]
  %s2 = inlined_call_operand.vmem [shape: f32[256,1], index: 2, kind: input, shape index: {}]
  %s3 = inlined_call_operand.vmem [shape: f32[128,256], index: 3, kind: input, shape index: {}]
  %s4 = inlined_call_operand.vmem [shape: f32[128,1], index: 4, kind: input, shape index: {}]
  %s5 = inlined_call_operand.vmem [shape: f32[1,128], index: 5, kind: input, shape index: {}]
  %s6 = inlined_call_operand.<no memory space> [shape: f32[1], index: 6, kind: input, shape index: {}]
  %s7 = inlined_call_operand.hbm [shape: f32[1,512], index: 7, kind: output, shape index: {}]
  %s8 = sld [smem:[#allocation0]]
  $region61: #{tpu_custom_call.1} parent=0
    _
  %s10 = ssub.s32 1, %s8
  %s11 = scalar_select 0, %s10, %s8
  %12 = sst [smem:[#allocation2]] %s6
  $region1: #{tpu_custom_call.1} parent=0
    #allocation3 [shape = 'u8[2048]{0}', space=vmem, size = 0x800, scoped, tag = 'output window, operand 0']
    #allocation4 [shape = 's32[2]{0}', space=sflag, size = 0x8, scoped, tag = 'scoped memory for tpu_custom_call.1']
    %13 = vsyncpa [#allocation4], 0
    %s14 = scalar_lea.sflag [#allocation4], 1
    %15 = vsyncpa %s14, 0
    loop: start=0, step=1, limit=4
    $region2: #{tpu_custom_call.1} parent=1 // loop_pre_header
      _
    $region3: #{tpu_custom_call.1} parent=1 // loop_header
      %s17 = sphi 0, %s21
      %p18 = scmp.ge.s32.totalorder %s17, 4
      %s27 = sphi 0, %s29
      %s30 = sphi 0, %s27
      %s31 = sphi 0, %s30
      %s47 = sphi 0, %s31
      %s51 = sphi 0, %s51
      %s53 = sphi 0, %s51
      %s54 = sphi 0, %s53
      %s68 = sphi 0, %s54
      %s72 = sphi 0, %s72
      %s74 = sphi 0, %s72
      %s75 = sphi 0, %s74
      %s89 = sphi 0, %s75
      %s93 = sphi 0, %s93
      %s95 = sphi 0, %s93
      %s96 = sphi 0, %s95
      %s110 = sphi 0, %s96
      %s114 = sphi 0, %s114
      %s116 = sphi 0, %s114
      %s117 = sphi 0, %s116
      %s131 = sphi 0, %s117
      %s135 = sphi 0, %s135
      %s137 = sphi 0, %s135
      %s138 = sphi 0, %s137
      %s152 = sphi 0, %s138
      %s156 = sphi 0, %s156
      %s158 = sphi 0, %s156
      %s159 = sphi 0, %s158
      %s173 = sphi 0, %s159
      %s179 = sphi 0, %s181
      %s182 = sphi 0, %s179
      %s183 = sphi 0, %s182
      %s199 = sphi 0, %s183
    $region4: #{tpu_custom_call.1} parent=1 // loop_header_branch
      %20 = sbr.rel (%p18) target = $region8
    $region5: #{tpu_custom_call.1} parent=1 // loop_body
      %s22 = ssub.s32 %s17, 1
      %s23 = ssub.s32 %s17, 2
      %s24 = sadd.s32 %s17, 1
      %s25 = ssub.s32 %s17, %s24
      %p26 = scmp.eq.s32.totalorder %s25, 0
      %s28 = sadd.s32 %s27, 1
      %s29 = scalar_select %p26, %s27, %s28
      %p32 = pneg %p26
      %p33 = scmp.eq.s32.totalorder %s17, 1
      %p34 = por %p32, %p33
      %p35 = scmp.ne.s32.totalorder %s27, %s30
      %p36 = scmp.eq.s32.totalorder %s17, 0
      %p37 = por %p35, %p36
      %p38 = scmp.ne.s32.totalorder %s27, %s30
      %p39 = scmp.eq.s32.totalorder %s22, 1
      %p40 = por %p38, %p39
      %p41 = scmp.ne.s32.totalorder %s30, %s31
      %p42 = scmp.eq.s32.totalorder %s22, 0
      %p43 = por %p41, %p42
      %p44 = scmp.ne.s32.totalorder %s30, %s31
      %p45 = scmp.eq.s32.totalorder %s23, 1
      %p46 = por %p44, %p45
      %p48 = scmp.ne.s32.totalorder %s31, %s47
      %p49 = scmp.eq.s32.totalorder %s23, 0
      %p50 = por %p48, %p49
      %s52 = sadd.s32 %s51, 1
      %p55 = scmp.eq.s32.totalorder %s17, 1
      %p56 = scmp.ne.s32.totalorder %s51, %s53
      %p57 = scmp.eq.s32.totalorder %s17, 0
      %p58 = por %p56, %p57
      %p59 = scmp.ne.s32.totalorder %s51, %s53
      %p60 = scmp.eq.s32.totalorder %s22, 1
      %p61 = por %p59, %p60
      %p62 = scmp.ne.s32.totalorder %s53, %s54
      %p63 = scmp.eq.s32.totalorder %s22, 0
      %p64 = por %p62, %p63
      %p65 = scmp.ne.s32.totalorder %s53, %s54
      %p66 = scmp.eq.s32.totalorder %s23, 1
      %p67 = por %p65, %p66
      %p69 = scmp.ne.s32.totalorder %s54, %s68
      %p70 = scmp.eq.s32.totalorder %s23, 0
      %p71 = por %p69, %p70
      %s73 = sadd.s32 %s72, 1
      %p76 = scmp.eq.s32.totalorder %s17, 1
      %p77 = scmp.ne.s32.totalorder %s72, %s74
      %p78 = scmp.eq.s32.totalorder %s17, 0
      %p79 = por %p77, %p78
      %p80 = scmp.ne.s32.totalorder %s72, %s74
      %p81 = scmp.eq.s32.totalorder %s22, 1
      %p82 = por %p80, %p81
      %p83 = scmp.ne.s32.totalorder %s74, %s75
      %p84 = scmp.eq.s32.totalorder %s22, 0
      %p85 = por %p83, %p84
      %p86 = scmp.ne.s32.totalorder %s74, %s75
      %p87 = scmp.eq.s32.totalorder %s23, 1
      %p88 = por %p86, %p87
      %p90 = scmp.ne.s32.totalorder %s75, %s89
      %p91 = scmp.eq.s32.totalorder %s23, 0
      %p92 = por %p90, %p91
      %s94 = sadd.s32 %s93, 1
      %p97 = scmp.eq.s32.totalorder %s17, 1
      %p98 = scmp.ne.s32.totalorder %s93, %s95
      %p99 = scmp.eq.s32.totalorder %s17, 0
      %p100 = por %p98, %p99
      %p101 = scmp.ne.s32.totalorder %s93, %s95
      %p102 = scmp.eq.s32.totalorder %s22, 1
      %p103 = por %p101, %p102
      %p104 = scmp.ne.s32.totalorder %s95, %s96
      %p105 = scmp.eq.s32.totalorder %s22, 0
      %p106 = por %p104, %p105
      %p107 = scmp.ne.s32.totalorder %s95, %s96
      %p108 = scmp.eq.s32.totalorder %s23, 1
      %p109 = por %p107, %p108
      %p111 = scmp.ne.s32.totalorder %s96, %s110
      %p112 = scmp.eq.s32.totalorder %s23, 0
      %p113 = por %p111, %p112
      %s115 = sadd.s32 %s114, 1
      %p118 = scmp.eq.s32.totalorder %s17, 1
      %p119 = scmp.ne.s32.totalorder %s114, %s116
      %p120 = scmp.eq.s32.totalorder %s17, 0
      %p121 = por %p119, %p120
      %p122 = scmp.ne.s32.totalorder %s114, %s116
      %p123 = scmp.eq.s32.totalorder %s22, 1
      %p124 = por %p122, %p123
      %p125 = scmp.ne.s32.totalorder %s116, %s117
      %p126 = scmp.eq.s32.totalorder %s22, 0
      %p127 = por %p125, %p126
      %p128 = scmp.ne.s32.totalorder %s116, %s117
      %p129 = scmp.eq.s32.totalorder %s23, 1
      %p130 = por %p128, %p129
      %p132 = scmp.ne.s32.totalorder %s117, %s131
      %p133 = scmp.eq.s32.totalorder %s23, 0
      %p134 = por %p132, %p133
      %s136 = sadd.s32 %s135, 1
      %p139 = scmp.eq.s32.totalorder %s17, 1
      %p140 = scmp.ne.s32.totalorder %s135, %s137
      %p141 = scmp.eq.s32.totalorder %s17, 0
      %p142 = por %p140, %p141
      %p143 = scmp.ne.s32.totalorder %s135, %s137
      %p144 = scmp.eq.s32.totalorder %s22, 1
      %p145 = por %p143, %p144
      %p146 = scmp.ne.s32.totalorder %s137, %s138
      %p147 = scmp.eq.s32.totalorder %s22, 0
      %p148 = por %p146, %p147
      %p149 = scmp.ne.s32.totalorder %s137, %s138
      %p150 = scmp.eq.s32.totalorder %s23, 1
      %p151 = por %p149, %p150
      %p153 = scmp.ne.s32.totalorder %s138, %s152
      %p154 = scmp.eq.s32.totalorder %s23, 0
      %p155 = por %p153, %p154
      %s157 = sadd.s32 %s156, 1
      %p160 = scmp.eq.s32.totalorder %s17, 1
      %p161 = scmp.ne.s32.totalorder %s156, %s158
      %p162 = scmp.eq.s32.totalorder %s17, 0
      %p163 = por %p161, %p162
      %p164 = scmp.ne.s32.totalorder %s156, %s158
      %p165 = scmp.eq.s32.totalorder %s22, 1
      %p166 = por %p164, %p165
      %p167 = scmp.ne.s32.totalorder %s158, %s159
      %p168 = scmp.eq.s32.totalorder %s22, 0
      %p169 = por %p167, %p168
      %p170 = scmp.ne.s32.totalorder %s158, %s159
      %p171 = scmp.eq.s32.totalorder %s23, 1
      %p172 = por %p170, %p171
      %p174 = scmp.ne.s32.totalorder %s159, %s173
      %p175 = scmp.eq.s32.totalorder %s23, 0
      %p176 = por %p174, %p175
      %s177 = ssub.s32 %s17, %s24
      %p178 = scmp.eq.s32.totalorder %s177, 0
      %s180 = sadd.s32 %s179, 1
      %s181 = scalar_select %p178, %s179, %s180
      %p184 = pneg %p178
      %p185 = scmp.eq.s32.totalorder %s17, 1
      %p186 = por %p184, %p185
      %p187 = scmp.ne.s32.totalorder %s179, %s182
      %p188 = scmp.eq.s32.totalorder %s17, 0
      %p189 = por %p187, %p188
      %p190 = scmp.ne.s32.totalorder %s179, %s182
      %p191 = scmp.eq.s32.totalorder %s22, 1
      %p192 = por %p190, %p191
      %p193 = scmp.ne.s32.totalorder %s182, %s183
      %p194 = scmp.eq.s32.totalorder %s22, 0
      %p195 = por %p193, %p194
      %p196 = scmp.ne.s32.totalorder %s182, %s183
      %p197 = scmp.eq.s32.totalorder %s23, 1
      %p198 = por %p196, %p197
      %p200 = scmp.ne.s32.totalorder %s183, %s199
      %p201 = scmp.eq.s32.totalorder %s23, 0
      %p202 = por %p200, %p201
      %p203 = scmp.le.s32.totalorder 1, %s17
      %p204 = scmp.lt.s32.totalorder %s17, 3
      %p205 = pnand %p203, %p204
      %p206 = pneg %p205
      // Predicated region
      $region9: #{tpu_custom_call.1} parent=5 // pred_check
        _
      $region10: #{tpu_custom_call.1} parent=5 // pred_check_branch
        %208 = sbr.rel (%p205) target = $region12
      $region11: #{tpu_custom_call.1} parent=5 // pred_region
        %s209 = ssub.s32 %s17, 1
        // Predicated region
        $region13: #{tpu_custom_call.1} parent=11 // pred_check
          %p210 = pneg %p64
        $region14: #{tpu_custom_call.1} parent=11 // pred_check_branch
          %212 = sbr.rel (%p210) target = $region16
        $region15: #{tpu_custom_call.1} parent=11 // pred_region
          _
        $region16: #{tpu_custom_call.1} parent=11 // pred_fallthru
          _
        // Predicated region
        $region17: #{tpu_custom_call.1} parent=11 // pred_check
          %p213 = pneg %p85
        $region18: #{tpu_custom_call.1} parent=11 // pred_check_branch
          %215 = sbr.rel (%p213) target = $region20
        $region19: #{tpu_custom_call.1} parent=11 // pred_region
          _
        $region20: #{tpu_custom_call.1} parent=11 // pred_fallthru
          _
        // Predicated region
        $region21: #{tpu_custom_call.1} parent=11 // pred_check
          %p216 = pneg %p106
        $region22: #{tpu_custom_call.1} parent=11 // pred_check_branch
          %218 = sbr.rel (%p216) target = $region24
        $region23: #{tpu_custom_call.1} parent=11 // pred_region
          _
        $region24: #{tpu_custom_call.1} parent=11 // pred_fallthru
          _
        // Predicated region
        $region25: #{tpu_custom_call.1} parent=11 // pred_check
          %p219 = pneg %p127
        $region26: #{tpu_custom_call.1} parent=11 // pred_check_branch
          %221 = sbr.rel (%p219) target = $region28
        $region27: #{tpu_custom_call.1} parent=11 // pred_region
          _
        $region28: #{tpu_custom_call.1} parent=11 // pred_fallthru
          _
        // Predicated region
        $region29: #{tpu_custom_call.1} parent=11 // pred_check
          %p222 = pneg %p148
        $region30: #{tpu_custom_call.1} parent=11 // pred_check_branch
          %224 = sbr.rel (%p222) target = $region32
        $region31: #{tpu_custom_call.1} parent=11 // pred_region
          _
        $region32: #{tpu_custom_call.1} parent=11 // pred_fallthru
          _
        // Predicated region
        $region33: #{tpu_custom_call.1} parent=11 // pred_check
          %p225 = pneg %p169
        $region34: #{tpu_custom_call.1} parent=11 // pred_check_branch
          %227 = sbr.rel (%p225) target = $region36
        $region35: #{tpu_custom_call.1} parent=11 // pred_region
          _
        $region36: #{tpu_custom_call.1} parent=11 // pred_fallthru
          _
      $region12: #{tpu_custom_call.1} parent=5 // pred_fallthru
        _
      %p228 = scmp.lt.s32.totalorder %s17, 2
      // Predicated region
      $region37: #{tpu_custom_call.1} parent=5 // pred_check
        %p229 = pneg %p228
      $region38: #{tpu_custom_call.1} parent=5 // pred_check_branch
        %231 = sbr.rel (%p229) target = $region40
      $region39: #{tpu_custom_call.1} parent=5 // pred_region
        // Predicated region
        $region41: #{tpu_custom_call.1} parent=39 // pred_check
          %p232 = pneg %p37
        $region42: #{tpu_custom_call.1} parent=39 // pred_check_branch
          %234 = sbr.rel (%p232) target = $region44
        $region43: #{tpu_custom_call.1} parent=39 // pred_region
          %s235 = smul.u32 2, %s17
          %p236 = scmp.lt.s32.totalorder %s235, 3
          %s237 = scalar_select %p236, %s235, 3
          %s238 = scalar_lea.vmem %s0, %s237
          %s239 = smul.u32 2, %s17
        $region44: #{tpu_custom_call.1} parent=39 // pred_fallthru
          _
      $region40: #{tpu_custom_call.1} parent=5 // pred_fallthru
        _
      %p240 = scmp.le.s32.totalorder 1, %s17
      %p241 = scmp.lt.s32.totalorder %s17, 3
      %p242 = pnand %p240, %p241
      %p243 = pneg %p242
      // Predicated region
      $region45: #{tpu_custom_call.1} parent=5 // pred_check
        _
      $region46: #{tpu_custom_call.1} parent=5 // pred_check_branch
        %245 = sbr.rel (%p242) target = $region48
      $region47: #{tpu_custom_call.1} parent=5 // pred_region
        %s246 = ssub.s32 %s17, 1
        %s247 = smul.u32 2, %s22
        %p248 = scmp.lt.s32.totalorder %s247, 3
        %s249 = scalar_select %p248, %s247, 3
        %s250 = scalar_lea.vmem %s0, %s249
        %p251 = pneg %p43
        %p252 = pneg %p40
        %p253 = pneg %p64
        %p254 = pneg %p61
        %p255 = pneg %p85
        %p256 = pneg %p82
        %p257 = pneg %p106
        %p258 = pneg %p103
        %p259 = pneg %p127
        %p260 = pneg %p124
        %p261 = pneg %p148
        %p262 = pneg %p145
        %p263 = pneg %p169
        %p264 = pneg %p166
        %p265 = pneg %p195
        %p266 = pneg %p192
        %s267 = sand.u32 %s182, 1
        %s268 = scalar_lea.sflag [#allocation4], %s267
        %s269 = sand.u32 %s182, 1
        %s270 = smul.addr %s269, 2
        %s271 = scalar_lea.vmem [#allocation3], %s270
        %s272 = smul.u32 2, %s22
        %p273 = scmp.lt.s32.totalorder %s272, 3
        %s274 = scalar_select %p273, %s272, 3
        %s275 = scalar_lea.vmem %s0, %s274
        %s276 = smul.u32 2, %s22
        %s277 = smul.u32 2, %s22
        %v278 = vld [vmem:[%s275] sm:$0x3]
        %v279 = vld [vmem:[%s1] sm:$0xff]
        %v280 = vld [vmem:[%s1 + $0x8] sm:$0xff]
        %v281 = vld [vmem:[%s1 + $0x10] sm:$0xff]
        %v282 = vld [vmem:[%s1 + $0x18] sm:$0xff]
        %v283 = vld [vmem:[%s1 + $0x20] sm:$0xff]
        %v284 = vld [vmem:[%s1 + $0x28] sm:$0xff]
        %v285 = vld [vmem:[%s1 + $0x30] sm:$0xff]
        %v286 = vld [vmem:[%s1 + $0x38] sm:$0xff]
        %v287 = vld [vmem:[%s1 + $0x40] sm:$0xff]
        %v288 = vld [vmem:[%s1 + $0x48] sm:$0xff]
        %v289 = vld [vmem:[%s1 + $0x50] sm:$0xff]
        %v290 = vld [vmem:[%s1 + $0x58] sm:$0xff]
        %v291 = vld [vmem:[%s1 + $0x60] sm:$0xff]
        %v292 = vld [vmem:[%s1 + $0x68] sm:$0xff]
        %v293 = vld [vmem:[%s1 + $0x70] sm:$0xff]
        %v294 = vld [vmem:[%s1 + $0x78] sm:$0xff]
        %v295 = vld [vmem:[%s1 + $0x80] sm:$0xff]
        %v296 = vld [vmem:[%s1 + $0x88] sm:$0xff]
        %v297 = vld [vmem:[%s1 + $0x90] sm:$0xff]
        %v298 = vld [vmem:[%s1 + $0x98] sm:$0xff]
        %v299 = vld [vmem:[%s1 + $0xa0] sm:$0xff]
        %v300 = vld [vmem:[%s1 + $0xa8] sm:$0xff]
        %v301 = vld [vmem:[%s1 + $0xb0] sm:$0xff]
        %v302 = vld [vmem:[%s1 + $0xb8] sm:$0xff]
        %v303 = vld [vmem:[%s1 + $0xc0] sm:$0xff]
        %v304 = vld [vmem:[%s1 + $0xc8] sm:$0xff]
        %v305 = vld [vmem:[%s1 + $0xd0] sm:$0xff]
        %v306 = vld [vmem:[%s1 + $0xd8] sm:$0xff]
        %v307 = vld [vmem:[%s1 + $0xe0] sm:$0xff]
        %v308 = vld [vmem:[%s1 + $0xe8] sm:$0xff]
        %v309 = vld [vmem:[%s1 + $0xf0] sm:$0xff]
        %v310 = vld [vmem:[%s1 + $0xf8] sm:$0xff]
        %312 = vset.pattern.permute.xlu0 0
        %313 = vperm.xlu0 %312, %v279
        %v314 = vpop.permute.xlu0 %313
        %317 = vset.pattern.permute.xlu0 0
        %318 = vperm.xlu0 %317, %v280
        %v319 = vpop.permute.xlu0 %318
        %322 = vset.pattern.permute.xlu0 0
        %323 = vperm.xlu0 %322, %v281
        %v324 = vpop.permute.xlu0 %323
        %327 = vset.pattern.permute.xlu0 0
        %328 = vperm.xlu0 %327, %v282
        %v329 = vpop.permute.xlu0 %328
        %332 = vset.pattern.permute.xlu0 0
        %333 = vperm.xlu0 %332, %v283
        %v334 = vpop.permute.xlu0 %333
        %337 = vset.pattern.permute.xlu0 0
        %338 = vperm.xlu0 %337, %v284
        %v339 = vpop.permute.xlu0 %338
        %342 = vset.pattern.permute.xlu0 0
        %343 = vperm.xlu0 %342, %v285
        %v344 = vpop.permute.xlu0 %343
        %347 = vset.pattern.permute.xlu0 0
        %348 = vperm.xlu0 %347, %v286
        %v349 = vpop.permute.xlu0 %348
        %352 = vset.pattern.permute.xlu0 0
        %353 = vperm.xlu0 %352, %v287
        %v354 = vpop.permute.xlu0 %353
        %357 = vset.pattern.permute.xlu0 0
        %358 = vperm.xlu0 %357, %v288
        %v359 = vpop.permute.xlu0 %358
        %362 = vset.pattern.permute.xlu0 0
        %363 = vperm.xlu0 %362, %v289
        %v364 = vpop.permute.xlu0 %363
        %367 = vset.pattern.permute.xlu0 0
        %368 = vperm.xlu0 %367, %v290
        %v369 = vpop.permute.xlu0 %368
        %372 = vset.pattern.permute.xlu0 0
        %373 = vperm.xlu0 %372, %v291
        %v374 = vpop.permute.xlu0 %373
        %377 = vset.pattern.permute.xlu0 0
        %378 = vperm.xlu0 %377, %v292
        %v379 = vpop.permute.xlu0 %378
        %382 = vset.pattern.permute.xlu0 0
        %383 = vperm.xlu0 %382, %v293
        %v384 = vpop.permute.xlu0 %383
        %387 = vset.pattern.permute.xlu0 0
        %388 = vperm.xlu0 %387, %v294
        %v389 = vpop.permute.xlu0 %388
        %392 = vset.pattern.permute.xlu0 0
        %393 = vperm.xlu0 %392, %v295
        %v394 = vpop.permute.xlu0 %393
        %397 = vset.pattern.permute.xlu0 0
        %398 = vperm.xlu0 %397, %v296
        %v399 = vpop.permute.xlu0 %398
        %402 = vset.pattern.permute.xlu0 0
        %403 = vperm.xlu0 %402, %v297
        %v404 = vpop.permute.xlu0 %403
        %407 = vset.pattern.permute.xlu0 0
        %408 = vperm.xlu0 %407, %v298
        %v409 = vpop.permute.xlu0 %408
        %412 = vset.pattern.permute.xlu0 0
        %413 = vperm.xlu0 %412, %v299
        %v414 = vpop.permute.xlu0 %413
        %417 = vset.pattern.permute.xlu0 0
        %418 = vperm.xlu0 %417, %v300
        %v419 = vpop.permute.xlu0 %418
        %422 = vset.pattern.permute.xlu0 0
        %423 = vperm.xlu0 %422, %v301
        %v424 = vpop.permute.xlu0 %423
        %427 = vset.pattern.permute.xlu0 0
        %428 = vperm.xlu0 %427, %v302
        %v429 = vpop.permute.xlu0 %428
        %432 = vset.pattern.permute.xlu0 0
        %433 = vperm.xlu0 %432, %v303
        %v434 = vpop.permute.xlu0 %433
        %437 = vset.pattern.permute.xlu0 0
        %438 = vperm.xlu0 %437, %v304
        %v439 = vpop.permute.xlu0 %438
        %442 = vset.pattern.permute.xlu0 0
        %443 = vperm.xlu0 %442, %v305
        %v444 = vpop.permute.xlu0 %443
        %447 = vset.pattern.permute.xlu0 0
        %448 = vperm.xlu0 %447, %v306
        %v449 = vpop.permute.xlu0 %448
        %452 = vset.pattern.permute.xlu0 0
        %453 = vperm.xlu0 %452, %v307
        %v454 = vpop.permute.xlu0 %453
        %457 = vset.pattern.permute.xlu0 0
        %458 = vperm.xlu0 %457, %v308
        %v459 = vpop.permute.xlu0 %458
        %462 = vset.pattern.permute.xlu0 0
        %463 = vperm.xlu0 %462, %v309
        %v464 = vpop.permute.xlu0 %463
        %467 = vset.pattern.permute.xlu0 0
        %468 = vperm.xlu0 %467, %v310
        %v469 = vpop.permute.xlu0 %468
        %v472 = vlaneseq
        %v473 = vshrl.u32 %v472, 7
        %v474 = vsub.s32 0, %v473
        %v475 = vrot.slane %v278, %v474
        %v476 = vlaneseq
        %v477 = vshrl.u32 %v476, 7
        %v478 = vsub.s32 1, %v477
        %v479 = vrot.slane %v278, %v478
        %v482 = vmul.f32 %v314, %v475
        %v483 = vmul.f32 %v314, %v479
        %v484 = vmul.f32 %v319, %v475
        %v485 = vmul.f32 %v319, %v479
        %v486 = vmul.f32 %v324, %v475
        %v487 = vmul.f32 %v324, %v479
        %v488 = vmul.f32 %v329, %v475
        %v489 = vmul.f32 %v329, %v479
        %v490 = vmul.f32 %v334, %v475
        %v491 = vmul.f32 %v334, %v479
        %v492 = vmul.f32 %v339, %v475
        %v493 = vmul.f32 %v339, %v479
        %v494 = vmul.f32 %v344, %v475
        %v495 = vmul.f32 %v344, %v479
        %v496 = vmul.f32 %v349, %v475
        %v497 = vmul.f32 %v349, %v479
        %v498 = vmul.f32 %v354, %v475
        %v499 = vmul.f32 %v354, %v479
        %v500 = vmul.f32 %v359, %v475
        %v501 = vmul.f32 %v359, %v479
        %v502 = vmul.f32 %v364, %v475
        %v503 = vmul.f32 %v364, %v479
        %v504 = vmul.f32 %v369, %v475
        %v505 = vmul.f32 %v369, %v479
        %v506 = vmul.f32 %v374, %v475
        %v507 = vmul.f32 %v374, %v479
        %v508 = vmul.f32 %v379, %v475
        %v509 = vmul.f32 %v379, %v479
        %v510 = vmul.f32 %v384, %v475
        %v511 = vmul.f32 %v384, %v479
        %v512 = vmul.f32 %v389, %v475
        %v513 = vmul.f32 %v389, %v479
        %v514 = vmul.f32 %v394, %v475
        %v515 = vmul.f32 %v394, %v479
        %v516 = vmul.f32 %v399, %v475
        %v517 = vmul.f32 %v399, %v479
        %v518 = vmul.f32 %v404, %v475
        %v519 = vmul.f32 %v404, %v479
        %v520 = vmul.f32 %v409, %v475
        %v521 = vmul.f32 %v409, %v479
        %v522 = vmul.f32 %v414, %v475
        %v523 = vmul.f32 %v414, %v479
        %v524 = vmul.f32 %v419, %v475
        %v525 = vmul.f32 %v419, %v479
        %v526 = vmul.f32 %v424, %v475
        %v527 = vmul.f32 %v424, %v479
        %v528 = vmul.f32 %v429, %v475
        %v529 = vmul.f32 %v429, %v479
        %v530 = vmul.f32 %v434, %v475
        %v531 = vmul.f32 %v434, %v479
        %v532 = vmul.f32 %v439, %v475
        %v533 = vmul.f32 %v439, %v479
        %v534 = vmul.f32 %v444, %v475
        %v535 = vmul.f32 %v444, %v479
        %v536 = vmul.f32 %v449, %v475
        %v537 = vmul.f32 %v449, %v479
        %v538 = vmul.f32 %v454, %v475
        %v539 = vmul.f32 %v454, %v479
        %v540 = vmul.f32 %v459, %v475
        %v541 = vmul.f32 %v459, %v479
        %v542 = vmul.f32 %v464, %v475
        %v543 = vmul.f32 %v464, %v479
        %v544 = vmul.f32 %v469, %v475
        %v545 = vmul.f32 %v469, %v479
        %v546 = vld [vmem:[%s2] sm:$0xff]
        %v547 = vld [vmem:[%s2 + $0x8] sm:$0xff]
        %v548 = vld [vmem:[%s2 + $0x10] sm:$0xff]
        %v549 = vld [vmem:[%s2 + $0x18] sm:$0xff]
        %v550 = vld [vmem:[%s2 + $0x20] sm:$0xff]
        %v551 = vld [vmem:[%s2 + $0x28] sm:$0xff]
        %v552 = vld [vmem:[%s2 + $0x30] sm:$0xff]
        %v553 = vld [vmem:[%s2 + $0x38] sm:$0xff]
        %v554 = vld [vmem:[%s2 + $0x40] sm:$0xff]
        %v555 = vld [vmem:[%s2 + $0x48] sm:$0xff]
        %v556 = vld [vmem:[%s2 + $0x50] sm:$0xff]
        %v557 = vld [vmem:[%s2 + $0x58] sm:$0xff]
        %v558 = vld [vmem:[%s2 + $0x60] sm:$0xff]
        %v559 = vld [vmem:[%s2 + $0x68] sm:$0xff]
        %v560 = vld [vmem:[%s2 + $0x70] sm:$0xff]
        %v561 = vld [vmem:[%s2 + $0x78] sm:$0xff]
        %v562 = vld [vmem:[%s2 + $0x80] sm:$0xff]
        %v563 = vld [vmem:[%s2 + $0x88] sm:$0xff]
        %v564 = vld [vmem:[%s2 + $0x90] sm:$0xff]
        %v565 = vld [vmem:[%s2 + $0x98] sm:$0xff]
        %v566 = vld [vmem:[%s2 + $0xa0] sm:$0xff]
        %v567 = vld [vmem:[%s2 + $0xa8] sm:$0xff]
        %v568 = vld [vmem:[%s2 + $0xb0] sm:$0xff]
        %v569 = vld [vmem:[%s2 + $0xb8] sm:$0xff]
        %v570 = vld [vmem:[%s2 + $0xc0] sm:$0xff]
        %v571 = vld [vmem:[%s2 + $0xc8] sm:$0xff]
        %v572 = vld [vmem:[%s2 + $0xd0] sm:$0xff]
        %v573 = vld [vmem:[%s2 + $0xd8] sm:$0xff]
        %v574 = vld [vmem:[%s2 + $0xe0] sm:$0xff]
        %v575 = vld [vmem:[%s2 + $0xe8] sm:$0xff]
        %v576 = vld [vmem:[%s2 + $0xf0] sm:$0xff]
        %v577 = vld [vmem:[%s2 + $0xf8] sm:$0xff]
        %579 = vset.pattern.permute.xlu0 0
        %580 = vperm.xlu0 %579, %v546
        %v581 = vpop.permute.xlu0 %580
        %584 = vset.pattern.permute.xlu0 0
        %585 = vperm.xlu0 %584, %v547
        %v586 = vpop.permute.xlu0 %585
        %589 = vset.pattern.permute.xlu0 0
        %590 = vperm.xlu0 %589, %v548
        %v591 = vpop.permute.xlu0 %590
        %594 = vset.pattern.permute.xlu0 0
        %595 = vperm.xlu0 %594, %v549
        %v596 = vpop.permute.xlu0 %595
        %599 = vset.pattern.permute.xlu0 0
        %600 = vperm.xlu0 %599, %v550
        %v601 = vpop.permute.xlu0 %600
        %604 = vset.pattern.permute.xlu0 0
        %605 = vperm.xlu0 %604, %v551
        %v606 = vpop.permute.xlu0 %605
        %609 = vset.pattern.permute.xlu0 0
        %610 = vperm.xlu0 %609, %v552
        %v611 = vpop.permute.xlu0 %610
        %614 = vset.pattern.permute.xlu0 0
        %615 = vperm.xlu0 %614, %v553
        %v616 = vpop.permute.xlu0 %615
        %619 = vset.pattern.permute.xlu0 0
        %620 = vperm.xlu0 %619, %v554
        %v621 = vpop.permute.xlu0 %620
        %624 = vset.pattern.permute.xlu0 0
        %625 = vperm.xlu0 %624, %v555
        %v626 = vpop.permute.xlu0 %625
        %629 = vset.pattern.permute.xlu0 0
        %630 = vperm.xlu0 %629, %v556
        %v631 = vpop.permute.xlu0 %630
        %634 = vset.pattern.permute.xlu0 0
        %635 = vperm.xlu0 %634, %v557
        %v636 = vpop.permute.xlu0 %635
        %639 = vset.pattern.permute.xlu0 0
        %640 = vperm.xlu0 %639, %v558
        %v641 = vpop.permute.xlu0 %640
        %644 = vset.pattern.permute.xlu0 0
        %645 = vperm.xlu0 %644, %v559
        %v646 = vpop.permute.xlu0 %645
        %649 = vset.pattern.permute.xlu0 0
        %650 = vperm.xlu0 %649, %v560
        %v651 = vpop.permute.xlu0 %650
        %654 = vset.pattern.permute.xlu0 0
        %655 = vperm.xlu0 %654, %v561
        %v656 = vpop.permute.xlu0 %655
        %659 = vset.pattern.permute.xlu0 0
        %660 = vperm.xlu0 %659, %v562
        %v661 = vpop.permute.xlu0 %660
        %664 = vset.pattern.permute.xlu0 0
        %665 = vperm.xlu0 %664, %v563
        %v666 = vpop.permute.xlu0 %665
        %669 = vset.pattern.permute.xlu0 0
        %670 = vperm.xlu0 %669, %v564
        %v671 = vpop.permute.xlu0 %670
        %674 = vset.pattern.permute.xlu0 0
        %675 = vperm.xlu0 %674, %v565
        %v676 = vpop.permute.xlu0 %675
        %679 = vset.pattern.permute.xlu0 0
        %680 = vperm.xlu0 %679, %v566
        %v681 = vpop.permute.xlu0 %680
        %684 = vset.pattern.permute.xlu0 0
        %685 = vperm.xlu0 %684, %v567
        %v686 = vpop.permute.xlu0 %685
        %689 = vset.pattern.permute.xlu0 0
        %690 = vperm.xlu0 %689, %v568
        %v691 = vpop.permute.xlu0 %690
        %694 = vset.pattern.permute.xlu0 0
        %695 = vperm.xlu0 %694, %v569
        %v696 = vpop.permute.xlu0 %695
        %699 = vset.pattern.permute.xlu0 0
        %700 = vperm.xlu0 %699, %v570
        %v701 = vpop.permute.xlu0 %700
        %704 = vset.pattern.permute.xlu0 0
        %705 = vperm.xlu0 %704, %v571
        %v706 = vpop.permute.xlu0 %705
        %709 = vset.pattern.permute.xlu0 0
        %710 = vperm.xlu0 %709, %v572
        %v711 = vpop.permute.xlu0 %710
        %714 = vset.pattern.permute.xlu0 0
        %715 = vperm.xlu0 %714, %v573
        %v716 = vpop.permute.xlu0 %715
        %719 = vset.pattern.permute.xlu0 0
        %720 = vperm.xlu0 %719, %v574
        %v721 = vpop.permute.xlu0 %720
        %724 = vset.pattern.permute.xlu0 0
        %725 = vperm.xlu0 %724, %v575
        %v726 = vpop.permute.xlu0 %725
        %729 = vset.pattern.permute.xlu0 0
        %730 = vperm.xlu0 %729, %v576
        %v731 = vpop.permute.xlu0 %730
        %734 = vset.pattern.permute.xlu0 0
        %735 = vperm.xlu0 %734, %v577
        %v736 = vpop.permute.xlu0 %735
        %v738 = vadd.f32 %v482, %v581
        %v739 = vadd.f32 %v483, %v581
        %v740 = vadd.f32 %v484, %v586
        %v741 = vadd.f32 %v485, %v586
        %v742 = vadd.f32 %v486, %v591
        %v743 = vadd.f32 %v487, %v591
        %v744 = vadd.f32 %v488, %v596
        %v745 = vadd.f32 %v489, %v596
        %v746 = vadd.f32 %v490, %v601
        %v747 = vadd.f32 %v491, %v601
        %v748 = vadd.f32 %v492, %v606
        %v749 = vadd.f32 %v493, %v606
        %v750 = vadd.f32 %v494, %v611
        %v751 = vadd.f32 %v495, %v611
        %v752 = vadd.f32 %v496, %v616
        %v753 = vadd.f32 %v497, %v616
        %v754 = vadd.f32 %v498, %v621
        %v755 = vadd.f32 %v499, %v621
        %v756 = vadd.f32 %v500, %v626
        %v757 = vadd.f32 %v501, %v626
        %v758 = vadd.f32 %v502, %v631
        %v759 = vadd.f32 %v503, %v631
        %v760 = vadd.f32 %v504, %v636
        %v761 = vadd.f32 %v505, %v636
        %v762 = vadd.f32 %v506, %v641
        %v763 = vadd.f32 %v507, %v641
        %v764 = vadd.f32 %v508, %v646
        %v765 = vadd.f32 %v509, %v646
        %v766 = vadd.f32 %v510, %v651
        %v767 = vadd.f32 %v511, %v651
        %v768 = vadd.f32 %v512, %v656
        %v769 = vadd.f32 %v513, %v656
        %v770 = vadd.f32 %v514, %v661
        %v771 = vadd.f32 %v515, %v661
        %v772 = vadd.f32 %v516, %v666
        %v773 = vadd.f32 %v517, %v666
        %v774 = vadd.f32 %v518, %v671
        %v775 = vadd.f32 %v519, %v671
        %v776 = vadd.f32 %v520, %v676
        %v777 = vadd.f32 %v521, %v676
        %v778 = vadd.f32 %v522, %v681
        %v779 = vadd.f32 %v523, %v681
        %v780 = vadd.f32 %v524, %v686
        %v781 = vadd.f32 %v525, %v686
        %v782 = vadd.f32 %v526, %v691
        %v783 = vadd.f32 %v527, %v691
        %v784 = vadd.f32 %v528, %v696
        %v785 = vadd.f32 %v529, %v696
        %v786 = vadd.f32 %v530, %v701
        %v787 = vadd.f32 %v531, %v701
        %v788 = vadd.f32 %v532, %v706
        %v789 = vadd.f32 %v533, %v706
        %v790 = vadd.f32 %v534, %v711
        %v791 = vadd.f32 %v535, %v711
        %v792 = vadd.f32 %v536, %v716
        %v793 = vadd.f32 %v537, %v716
        %v794 = vadd.f32 %v538, %v721
        %v795 = vadd.f32 %v539, %v721
        %v796 = vadd.f32 %v540, %v726
        %v797 = vadd.f32 %v541, %v726
        %v798 = vadd.f32 %v542, %v731
        %v799 = vadd.f32 %v543, %v731
        %v800 = vadd.f32 %v544, %v736
        %v801 = vadd.f32 %v545, %v736
        %vm802 = vcmp.gt.f32.partialorder %v738, 0.0
        %vm803 = vcmp.gt.f32.partialorder %v739, 0.0
        %vm804 = vcmp.gt.f32.partialorder %v740, 0.0
        %vm805 = vcmp.gt.f32.partialorder %v741, 0.0
        %vm806 = vcmp.gt.f32.partialorder %v742, 0.0
        %vm807 = vcmp.gt.f32.partialorder %v743, 0.0
        %vm808 = vcmp.gt.f32.partialorder %v744, 0.0
        %vm809 = vcmp.gt.f32.partialorder %v745, 0.0
        %vm810 = vcmp.gt.f32.partialorder %v746, 0.0
        %vm811 = vcmp.gt.f32.partialorder %v747, 0.0
        %vm812 = vcmp.gt.f32.partialorder %v748, 0.0
        %vm813 = vcmp.gt.f32.partialorder %v749, 0.0
        %vm814 = vcmp.gt.f32.partialorder %v750, 0.0
        %vm815 = vcmp.gt.f32.partialorder %v751, 0.0
        %vm816 = vcmp.gt.f32.partialorder %v752, 0.0
        %vm817 = vcmp.gt.f32.partialorder %v753, 0.0
        %vm818 = vcmp.gt.f32.partialorder %v754, 0.0
        %vm819 = vcmp.gt.f32.partialorder %v755, 0.0
        %vm820 = vcmp.gt.f32.partialorder %v756, 0.0
        %vm821 = vcmp.gt.f32.partialorder %v757, 0.0
        %vm822 = vcmp.gt.f32.partialorder %v758, 0.0
        %vm823 = vcmp.gt.f32.partialorder %v759, 0.0
        %vm824 = vcmp.gt.f32.partialorder %v760, 0.0
        %vm825 = vcmp.gt.f32.partialorder %v761, 0.0
        %vm826 = vcmp.gt.f32.partialorder %v762, 0.0
        %vm827 = vcmp.gt.f32.partialorder %v763, 0.0
        %vm828 = vcmp.gt.f32.partialorder %v764, 0.0
        %vm829 = vcmp.gt.f32.partialorder %v765, 0.0
        %vm830 = vcmp.gt.f32.partialorder %v766, 0.0
        %vm831 = vcmp.gt.f32.partialorder %v767, 0.0
        %vm832 = vcmp.gt.f32.partialorder %v768, 0.0
        %vm833 = vcmp.gt.f32.partialorder %v769, 0.0
        %vm834 = vcmp.gt.f32.partialorder %v770, 0.0
        %vm835 = vcmp.gt.f32.partialorder %v771, 0.0
        %vm836 = vcmp.gt.f32.partialorder %v772, 0.0
        %vm837 = vcmp.gt.f32.partialorder %v773, 0.0
        %vm838 = vcmp.gt.f32.partialorder %v774, 0.0
        %vm839 = vcmp.gt.f32.partialorder %v775, 0.0
        %vm840 = vcmp.gt.f32.partialorder %v776, 0.0
        %vm841 = vcmp.gt.f32.partialorder %v777, 0.0
        %vm842 = vcmp.gt.f32.partialorder %v778, 0.0
        %vm843 = vcmp.gt.f32.partialorder %v779, 0.0
        %vm844 = vcmp.gt.f32.partialorder %v780, 0.0
        %vm845 = vcmp.gt.f32.partialorder %v781, 0.0
        %vm846 = vcmp.gt.f32.partialorder %v782, 0.0
        %vm847 = vcmp.gt.f32.partialorder %v783, 0.0
        %vm848 = vcmp.gt.f32.partialorder %v784, 0.0
        %vm849 = vcmp.gt.f32.partialorder %v785, 0.0
        %vm850 = vcmp.gt.f32.partialorder %v786, 0.0
        %vm851 = vcmp.gt.f32.partialorder %v787, 0.0
        %vm852 = vcmp.gt.f32.partialorder %v788, 0.0
        %vm853 = vcmp.gt.f32.partialorder %v789, 0.0
        %vm854 = vcmp.gt.f32.partialorder %v790, 0.0
        %vm855 = vcmp.gt.f32.partialorder %v791, 0.0
        %vm856 = vcmp.gt.f32.partialorder %v792, 0.0
        %vm857 = vcmp.gt.f32.partialorder %v793, 0.0
        %vm858 = vcmp.gt.f32.partialorder %v794, 0.0
        %vm859 = vcmp.gt.f32.partialorder %v795, 0.0
        %vm860 = vcmp.gt.f32.partialorder %v796, 0.0
        %vm861 = vcmp.gt.f32.partialorder %v797, 0.0
        %vm862 = vcmp.gt.f32.partialorder %v798, 0.0
        %vm863 = vcmp.gt.f32.partialorder %v799, 0.0
        %vm864 = vcmp.gt.f32.partialorder %v800, 0.0
        %vm865 = vcmp.gt.f32.partialorder %v801, 0.0
        %v866 = vmul.f32 %v738, 0.01
        %v867 = vmul.f32 %v739, 0.01
        %v868 = vmul.f32 %v740, 0.01
        %v869 = vmul.f32 %v741, 0.01
        %v870 = vmul.f32 %v742, 0.01
        %v871 = vmul.f32 %v743, 0.01
        %v872 = vmul.f32 %v744, 0.01
        %v873 = vmul.f32 %v745, 0.01
        %v874 = vmul.f32 %v746, 0.01
        %v875 = vmul.f32 %v747, 0.01
        %v876 = vmul.f32 %v748, 0.01
        %v877 = vmul.f32 %v749, 0.01
        %v878 = vmul.f32 %v750, 0.01
        %v879 = vmul.f32 %v751, 0.01
        %v880 = vmul.f32 %v752, 0.01
        %v881 = vmul.f32 %v753, 0.01
        %v882 = vmul.f32 %v754, 0.01
        %v883 = vmul.f32 %v755, 0.01
        %v884 = vmul.f32 %v756, 0.01
        %v885 = vmul.f32 %v757, 0.01
        %v886 = vmul.f32 %v758, 0.01
        %v887 = vmul.f32 %v759, 0.01
        %v888 = vmul.f32 %v760, 0.01
        %v889 = vmul.f32 %v761, 0.01
        %v890 = vmul.f32 %v762, 0.01
        %v891 = vmul.f32 %v763, 0.01
        %v892 = vmul.f32 %v764, 0.01
        %v893 = vmul.f32 %v765, 0.01
        %v894 = vmul.f32 %v766, 0.01
        %v895 = vmul.f32 %v767, 0.01
        %v896 = vmul.f32 %v768, 0.01
        %v897 = vmul.f32 %v769, 0.01
        %v898 = vmul.f32 %v770, 0.01
        %v899 = vmul.f32 %v771, 0.01
        %v900 = vmul.f32 %v772, 0.01
        %v901 = vmul.f32 %v773, 0.01
        %v902 = vmul.f32 %v774, 0.01
        %v903 = vmul.f32 %v775, 0.01
        %v904 = vmul.f32 %v776, 0.01
        %v905 = vmul.f32 %v777, 0.01
        %v906 = vmul.f32 %v778, 0.01
        %v907 = vmul.f32 %v779, 0.01
        %v908 = vmul.f32 %v780, 0.01
        %v909 = vmul.f32 %v781, 0.01
        %v910 = vmul.f32 %v782, 0.01
        %v911 = vmul.f32 %v783, 0.01
        %v912 = vmul.f32 %v784, 0.01
        %v913 = vmul.f32 %v785, 0.01
        %v914 = vmul.f32 %v786, 0.01
        %v915 = vmul.f32 %v787, 0.01
        %v916 = vmul.f32 %v788, 0.01
        %v917 = vmul.f32 %v789, 0.01
        %v918 = vmul.f32 %v790, 0.01
        %v919 = vmul.f32 %v791, 0.01
        %v920 = vmul.f32 %v792, 0.01
        %v921 = vmul.f32 %v793, 0.01
        %v922 = vmul.f32 %v794, 0.01
        %v923 = vmul.f32 %v795, 0.01
        %v924 = vmul.f32 %v796, 0.01
        %v925 = vmul.f32 %v797, 0.01
        %v926 = vmul.f32 %v798, 0.01
        %v927 = vmul.f32 %v799, 0.01
        %v928 = vmul.f32 %v800, 0.01
        %v929 = vmul.f32 %v801, 0.01
        %v930 = vsel %vm802, %v738, %v866
        %v931 = vsel %vm803, %v739, %v867
        %v932 = vsel %vm804, %v740, %v868
        %v933 = vsel %vm805, %v741, %v869
        %v934 = vsel %vm806, %v742, %v870
        %v935 = vsel %vm807, %v743, %v871
        %v936 = vsel %vm808, %v744, %v872
        %v937 = vsel %vm809, %v745, %v873
        %v938 = vsel %vm810, %v746, %v874
        %v939 = vsel %vm811, %v747, %v875
        %v940 = vsel %vm812, %v748, %v876
        %v941 = vsel %vm813, %v749, %v877
        %v942 = vsel %vm814, %v750, %v878
        %v943 = vsel %vm815, %v751, %v879
        %v944 = vsel %vm816, %v752, %v880
        %v945 = vsel %vm817, %v753, %v881
        %v946 = vsel %vm818, %v754, %v882
        %v947 = vsel %vm819, %v755, %v883
        %v948 = vsel %vm820, %v756, %v884
        %v949 = vsel %vm821, %v757, %v885
        %v950 = vsel %vm822, %v758, %v886
        %v951 = vsel %vm823, %v759, %v887
        %v952 = vsel %vm824, %v760, %v888
        %v953 = vsel %vm825, %v761, %v889
        %v954 = vsel %vm826, %v762, %v890
        %v955 = vsel %vm827, %v763, %v891
        %v956 = vsel %vm828, %v764, %v892
        %v957 = vsel %vm829, %v765, %v893
        %v958 = vsel %vm830, %v766, %v894
        %v959 = vsel %vm831, %v767, %v895
        %v960 = vsel %vm832, %v768, %v896
        %v961 = vsel %vm833, %v769, %v897
        %v962 = vsel %vm834, %v770, %v898
        %v963 = vsel %vm835, %v771, %v899
        %v964 = vsel %vm836, %v772, %v900
        %v965 = vsel %vm837, %v773, %v901
        %v966 = vsel %vm838, %v774, %v902
        %v967 = vsel %vm839, %v775, %v903
        %v968 = vsel %vm840, %v776, %v904
        %v969 = vsel %vm841, %v777, %v905
        %v970 = vsel %vm842, %v778, %v906
        %v971 = vsel %vm843, %v779, %v907
        %v972 = vsel %vm844, %v780, %v908
        %v973 = vsel %vm845, %v781, %v909
        %v974 = vsel %vm846, %v782, %v910
        %v975 = vsel %vm847, %v783, %v911
        %v976 = vsel %vm848, %v784, %v912
        %v977 = vsel %vm849, %v785, %v913
        %v978 = vsel %vm850, %v786, %v914
        %v979 = vsel %vm851, %v787, %v915
        %v980 = vsel %vm852, %v788, %v916
        %v981 = vsel %vm853, %v789, %v917
        %v982 = vsel %vm854, %v790, %v918
        %v983 = vsel %vm855, %v791, %v919
        %v984 = vsel %vm856, %v792, %v920
        %v985 = vsel %vm857, %v793, %v921
        %v986 = vsel %vm858, %v794, %v922
        %v987 = vsel %vm859, %v795, %v923
        %v988 = vsel %vm860, %v796, %v924
        %v989 = vsel %vm861, %v797, %v925
        %v990 = vsel %vm862, %v798, %v926
        %v991 = vsel %vm863, %v799, %v927
        %v992 = vsel %vm864, %v800, %v928
        %v993 = vsel %vm865, %v801, %v929
        %v994 = vld [vmem:[%s3] sm:$0xff]
        %v995 = vld [vmem:[%s3 + $0x8] sm:$0xff]
        %v996 = vld [vmem:[%s3 + $0x10] sm:$0xff]
        %v997 = vld [vmem:[%s3 + $0x18] sm:$0xff]
        %v998 = vld [vmem:[%s3 + $0x20] sm:$0xff]
        %v999 = vld [vmem:[%s3 + $0x28] sm:$0xff]
        %v1000 = vld [vmem:[%s3 + $0x30] sm:$0xff]
        %v1001 = vld [vmem:[%s3 + $0x38] sm:$0xff]
        %v1002 = vld [vmem:[%s3 + $0x40] sm:$0xff]
        %v1003 = vld [vmem:[%s3 + $0x48] sm:$0xff]
        %v1004 = vld [vmem:[%s3 + $0x50] sm:$0xff]
        %v1005 = vld [vmem:[%s3 + $0x58] sm:$0xff]
        %v1006 = vld [vmem:[%s3 + $0x60] sm:$0xff]
        %v1007 = vld [vmem:[%s3 + $0x68] sm:$0xff]
        %v1008 = vld [vmem:[%s3 + $0x70] sm:$0xff]
        %v1009 = vld [vmem:[%s3 + $0x78] sm:$0xff]
        %v1010 = vld [vmem:[%s3 + $0x80] sm:$0xff]
        %v1011 = vld [vmem:[%s3 + $0x88] sm:$0xff]
        %v1012 = vld [vmem:[%s3 + $0x90] sm:$0xff]
        %v1013 = vld [vmem:[%s3 + $0x98] sm:$0xff]
        %v1014 = vld [vmem:[%s3 + $0xa0] sm:$0xff]
        %v1015 = vld [vmem:[%s3 + $0xa8] sm:$0xff]
        %v1016 = vld [vmem:[%s3 + $0xb0] sm:$0xff]
        %v1017 = vld [vmem:[%s3 + $0xb8] sm:$0xff]
        %v1018 = vld [vmem:[%s3 + $0xc0] sm:$0xff]
        %v1019 = vld [vmem:[%s3 + $0xc8] sm:$0xff]
        %v1020 = vld [vmem:[%s3 + $0xd0] sm:$0xff]
        %v1021 = vld [vmem:[%s3 + $0xd8] sm:$0xff]
        %v1022 = vld [vmem:[%s3 + $0xe0] sm:$0xff]
        %v1023 = vld [vmem:[%s3 + $0xe8] sm:$0xff]
        %v1024 = vld [vmem:[%s3 + $0xf0] sm:$0xff]
        %v1025 = vld [vmem:[%s3 + $0xf8] sm:$0xff]
        %v1026 = vld [vmem:[%s4] sm:$0xff]
        %v1027 = vld [vmem:[%s4 + $0x8] sm:$0xff]
        %v1028 = vld [vmem:[%s4 + $0x10] sm:$0xff]
        %v1029 = vld [vmem:[%s4 + $0x18] sm:$0xff]
        %v1030 = vld [vmem:[%s4 + $0x20] sm:$0xff]
        %v1031 = vld [vmem:[%s4 + $0x28] sm:$0xff]
        %v1032 = vld [vmem:[%s4 + $0x30] sm:$0xff]
        %v1033 = vld [vmem:[%s4 + $0x38] sm:$0xff]
        %v1034 = vld [vmem:[%s4 + $0x40] sm:$0xff]
        %v1035 = vld [vmem:[%s4 + $0x48] sm:$0xff]
        %v1036 = vld [vmem:[%s4 + $0x50] sm:$0xff]
        %v1037 = vld [vmem:[%s4 + $0x58] sm:$0xff]
        %v1038 = vld [vmem:[%s4 + $0x60] sm:$0xff]
        %v1039 = vld [vmem:[%s4 + $0x68] sm:$0xff]
        %v1040 = vld [vmem:[%s4 + $0x70] sm:$0xff]
        %v1041 = vld [vmem:[%s4 + $0x78] sm:$0xff]
        %1043 = vset.pattern.permute.xlu0 0
        %1044 = vperm.xlu0 %1043, %v1026
        %v1045 = vpop.permute.xlu0 %1044
        %1048 = vset.pattern.permute.xlu0 0
        %1049 = vperm.xlu0 %1048, %v1027
        %v1050 = vpop.permute.xlu0 %1049
        %1053 = vset.pattern.permute.xlu0 0
        %1054 = vperm.xlu0 %1053, %v1028
        %v1055 = vpop.permute.xlu0 %1054
        %1058 = vset.pattern.permute.xlu0 0
        %1059 = vperm.xlu0 %1058, %v1029
        %v1060 = vpop.permute.xlu0 %1059
        %1063 = vset.pattern.permute.xlu0 0
        %1064 = vperm.xlu0 %1063, %v1030
        %v1065 = vpop.permute.xlu0 %1064
        %1068 = vset.pattern.permute.xlu0 0
        %1069 = vperm.xlu0 %1068, %v1031
        %v1070 = vpop.permute.xlu0 %1069
        %1073 = vset.pattern.permute.xlu0 0
        %1074 = vperm.xlu0 %1073, %v1032
        %v1075 = vpop.permute.xlu0 %1074
        %1078 = vset.pattern.permute.xlu0 0
        %1079 = vperm.xlu0 %1078, %v1033
        %v1080 = vpop.permute.xlu0 %1079
        %1083 = vset.pattern.permute.xlu0 0
        %1084 = vperm.xlu0 %1083, %v1034
        %v1085 = vpop.permute.xlu0 %1084
        %1088 = vset.pattern.permute.xlu0 0
        %1089 = vperm.xlu0 %1088, %v1035
        %v1090 = vpop.permute.xlu0 %1089
        %1093 = vset.pattern.permute.xlu0 0
        %1094 = vperm.xlu0 %1093, %v1036
        %v1095 = vpop.permute.xlu0 %1094
        %1098 = vset.pattern.permute.xlu0 0
        %1099 = vperm.xlu0 %1098, %v1037
        %v1100 = vpop.permute.xlu0 %1099
        %1103 = vset.pattern.permute.xlu0 0
        %1104 = vperm.xlu0 %1103, %v1038
        %v1105 = vpop.permute.xlu0 %1104
        %1108 = vset.pattern.permute.xlu0 0
        %1109 = vperm.xlu0 %1108, %v1039
        %v1110 = vpop.permute.xlu0 %1109
        %1113 = vset.pattern.permute.xlu0 0
        %1114 = vperm.xlu0 %1113, %v1040
        %v1115 = vpop.permute.xlu0 %1114
        %1118 = vset.pattern.permute.xlu0 0
        %1119 = vperm.xlu0 %1118, %v1041
        %v1120 = vpop.permute.xlu0 %1119
        %1122 = vmatprep.subr.mxu0 %v961
        %1123 = vmatpush1.msra.mxu0 %v960
        %1124 = vmatprep.subr.mxu0 %v959
        %1125 = vmatpush1.msra.mxu0 %v958
        %1126 = vmatprep.subr.mxu0 %v957
        %1127 = vmatpush1.msra.mxu0 %v956
        %1128 = vmatprep.subr.mxu0 %v955
        %1129 = vmatpush1.msra.mxu0 %v954
        %1130 = vmatprep.subr.mxu0 %v953
        %1131 = vmatpush1.msra.mxu0 %v952
        %1132 = vmatprep.subr.mxu0 %v951
        %1133 = vmatpush1.msra.mxu0 %v950
        %1134 = vmatprep.subr.mxu0 %v949
        %1135 = vmatpush1.msra.mxu0 %v948
        %1136 = vmatprep.subr.mxu0 %v947
        %1137 = vmatpush1.msra.mxu0 %v946
        %1138 = vmatprep.subr.mxu0 %v945
        %1139 = vmatpush1.msra.mxu0 %v944
        %1140 = vmatprep.subr.mxu0 %v943
        %1141 = vmatpush1.msra.mxu0 %v942
        %1142 = vmatprep.subr.mxu0 %v941
        %1143 = vmatpush1.msra.mxu0 %v940
        %1144 = vmatprep.subr.mxu0 %v939
        %1145 = vmatpush1.msra.mxu0 %v938
        %1146 = vmatprep.subr.mxu0 %v937
        %1147 = vmatpush1.msra.mxu0 %v936
        %1148 = vmatprep.subr.mxu0 %v935
        %1149 = vmatpush1.msra.mxu0 %v934
        %1150 = vmatprep.subr.mxu0 %v933
        %1151 = vmatpush1.msra.mxu0 %v932
        %1152 = vmatprep.subr.mxu0 %v931
        %1153 = vmatpush1.msra.mxu0 %v930
        %1154 = vmatprep.subr.mxu0 %v993
        %1155 = vmatpush2.msra.mxu0 %v992
        %1156 = vmatprep.subr.mxu0 %v991
        %1157 = vmatpush2.msra.mxu0 %v990
        %1158 = vmatprep.subr.mxu0 %v989
        %1159 = vmatpush2.msra.mxu0 %v988
        %1160 = vmatprep.subr.mxu0 %v987
        %1161 = vmatpush2.msra.mxu0 %v986
        %1162 = vmatprep.subr.mxu0 %v985
        %1163 = vmatpush2.msra.mxu0 %v984
        %1164 = vmatprep.subr.mxu0 %v983
        %1165 = vmatpush2.msra.mxu0 %v982
        %1166 = vmatprep.subr.mxu0 %v981
        %1167 = vmatpush2.msra.mxu0 %v980
        %1168 = vmatprep.subr.mxu0 %v979
        %1169 = vmatpush2.msra.mxu0 %v978
        %1170 = vmatprep.subr.mxu0 %v977
        %1171 = vmatpush2.msra.mxu0 %v976
        %1172 = vmatprep.subr.mxu0 %v975
        %1173 = vmatpush2.msra.mxu0 %v974
        %1174 = vmatprep.subr.mxu0 %v973
        %1175 = vmatpush2.msra.mxu0 %v972
        %1176 = vmatprep.subr.mxu0 %v971
        %1177 = vmatpush2.msra.mxu0 %v970
        %1178 = vmatprep.subr.mxu0 %v969
        %1179 = vmatpush2.msra.mxu0 %v968
        %1180 = vmatprep.subr.mxu0 %v967
        %1181 = vmatpush2.msra.mxu0 %v966
        %1182 = vmatprep.subr.mxu0 %v965
        %1183 = vmatpush2.msra.mxu0 %v964
        %1184 = vmatprep.subr.mxu0 %v963
        %1185 = vmatpush2.msra.mxu0 %v962
        %1186 = vmatprep.mubr.f32.mxu0 %v995
        %1187 = vmatmul.mubr.f32.gmra.mxu0 %v994
        %v1188 = vpop.f32.mrf.mxu0
        %v1189 = vadd.f32 %v1045, %v1188
        %v1190 = vpop.f32.mrf.mxu0
        %v1191 = vadd.f32 %v1045, %v1190
        %1192 = vmatprep.mubr.f32.mxu0 %v997
        %1193 = vmatmul.mubr.f32.gmra.mxu0 %v996
        %v1194 = vpop.f32.mrf.mxu0
        %v1195 = vadd.f32 %v1050, %v1194
        %v1196 = vpop.f32.mrf.mxu0
        %v1197 = vadd.f32 %v1050, %v1196
        %1198 = vmatprep.mubr.f32.mxu0 %v999
        %1199 = vmatmul.mubr.f32.gmra.mxu0 %v998
        %v1200 = vpop.f32.mrf.mxu0
        %v1201 = vadd.f32 %v1055, %v1200
        %v1202 = vpop.f32.mrf.mxu0
        %v1203 = vadd.f32 %v1055, %v1202
        %1204 = vmatprep.mubr.f32.mxu0 %v1001
        %1205 = vmatmul.mubr.f32.gmra.mxu0 %v1000
        %v1206 = vpop.f32.mrf.mxu0
        %v1207 = vadd.f32 %v1060, %v1206
        %v1208 = vpop.f32.mrf.mxu0
        %v1209 = vadd.f32 %v1060, %v1208
        %1210 = vmatprep.mubr.f32.mxu0 %v1003
        %1211 = vmatmul.mubr.f32.gmra.mxu0 %v1002
        %v1212 = vpop.f32.mrf.mxu0
        %v1213 = vadd.f32 %v1065, %v1212
        %v1214 = vpop.f32.mrf.mxu0
        %v1215 = vadd.f32 %v1065, %v1214
        %1216 = vmatprep.mubr.f32.mxu0 %v1005
        %1217 = vmatmul.mubr.f32.gmra.mxu0 %v1004
        %v1218 = vpop.f32.mrf.mxu0
        %v1219 = vadd.f32 %v1070, %v1218
        %v1220 = vpop.f32.mrf.mxu0
        %v1221 = vadd.f32 %v1070, %v1220
        %1222 = vmatprep.mubr.f32.mxu0 %v1007
        %1223 = vmatmul.mubr.f32.gmra.mxu0 %v1006
        %v1224 = vpop.f32.mrf.mxu0
        %v1225 = vadd.f32 %v1075, %v1224
        %v1226 = vpop.f32.mrf.mxu0
        %v1227 = vadd.f32 %v1075, %v1226
        %1228 = vmatprep.mubr.f32.mxu0 %v1009
        %1229 = vmatmul.mubr.f32.gmra.mxu0 %v1008
        %v1230 = vpop.f32.mrf.mxu0
        %v1231 = vadd.f32 %v1080, %v1230
        %v1232 = vpop.f32.mrf.mxu0
        %v1233 = vadd.f32 %v1080, %v1232
        %1234 = vmatprep.mubr.f32.mxu0 %v1011
        %1235 = vmatmul.mubr.f32.gmra.mxu0 %v1010
        %v1236 = vpop.f32.mrf.mxu0
        %v1237 = vadd.f32 %v1085, %v1236
        %v1238 = vpop.f32.mrf.mxu0
        %v1239 = vadd.f32 %v1085, %v1238
        %1240 = vmatprep.mubr.f32.mxu0 %v1013
        %1241 = vmatmul.mubr.f32.gmra.mxu0 %v1012
        %v1242 = vpop.f32.mrf.mxu0
        %v1243 = vadd.f32 %v1090, %v1242
        %v1244 = vpop.f32.mrf.mxu0
        %v1245 = vadd.f32 %v1090, %v1244
        %1246 = vmatprep.mubr.f32.mxu0 %v1015
        %1247 = vmatmul.mubr.f32.gmra.mxu0 %v1014
        %v1248 = vpop.f32.mrf.mxu0
        %v1249 = vadd.f32 %v1095, %v1248
        %v1250 = vpop.f32.mrf.mxu0
        %v1251 = vadd.f32 %v1095, %v1250
        %1252 = vmatprep.mubr.f32.mxu0 %v1017
        %1253 = vmatmul.mubr.f32.gmra.mxu0 %v1016
        %v1254 = vpop.f32.mrf.mxu0
        %v1255 = vadd.f32 %v1100, %v1254
        %v1256 = vpop.f32.mrf.mxu0
        %v1257 = vadd.f32 %v1100, %v1256
        %1258 = vmatprep.mubr.f32.mxu0 %v1019
        %1259 = vmatmul.mubr.f32.gmra.mxu0 %v1018
        %v1260 = vpop.f32.mrf.mxu0
        %v1261 = vadd.f32 %v1105, %v1260
        %v1262 = vpop.f32.mrf.mxu0
        %v1263 = vadd.f32 %v1105, %v1262
        %1264 = vmatprep.mubr.f32.mxu0 %v1021
        %1265 = vmatmul.mubr.f32.gmra.mxu0 %v1020
        %v1266 = vpop.f32.mrf.mxu0
        %v1267 = vadd.f32 %v1110, %v1266
        %v1268 = vpop.f32.mrf.mxu0
        %v1269 = vadd.f32 %v1110, %v1268
        %1270 = vmatprep.mubr.f32.mxu0 %v1023
        %1271 = vmatmul.mubr.f32.gmra.mxu0 %v1022
        %v1272 = vpop.f32.mrf.mxu0
        %v1273 = vadd.f32 %v1115, %v1272
        %v1274 = vpop.f32.mrf.mxu0
        %v1275 = vadd.f32 %v1115, %v1274
        %1276 = vmatprep.mubr.f32.mxu0 %v1025
        %1277 = vmatmul.mubr.f32.gmra.mxu0 %v1024
        %v1278 = vpop.f32.mrf.mxu0
        %v1279 = vadd.f32 %v1120, %v1278
        %v1280 = vpop.f32.mrf.mxu0
        %v1281 = vadd.f32 %v1120, %v1280
        %1282 = vdwg.mxu0
        %vm1283 = vcmp.gt.f32.partialorder %v1189, 0.0
        %vm1284 = vcmp.gt.f32.partialorder %v1191, 0.0
        %vm1285 = vcmp.gt.f32.partialorder %v1195, 0.0
        %vm1286 = vcmp.gt.f32.partialorder %v1197, 0.0
        %vm1287 = vcmp.gt.f32.partialorder %v1201, 0.0
        %vm1288 = vcmp.gt.f32.partialorder %v1203, 0.0
        %vm1289 = vcmp.gt.f32.partialorder %v1207, 0.0
        %vm1290 = vcmp.gt.f32.partialorder %v1209, 0.0
        %vm1291 = vcmp.gt.f32.partialorder %v1213, 0.0
        %vm1292 = vcmp.gt.f32.partialorder %v1215, 0.0
        %vm1293 = vcmp.gt.f32.partialorder %v1219, 0.0
        %vm1294 = vcmp.gt.f32.partialorder %v1221, 0.0
        %vm1295 = vcmp.gt.f32.partialorder %v1225, 0.0
        %vm1296 = vcmp.gt.f32.partialorder %v1227, 0.0
        %vm1297 = vcmp.gt.f32.partialorder %v1231, 0.0
        %vm1298 = vcmp.gt.f32.partialorder %v1233, 0.0
        %vm1299 = vcmp.gt.f32.partialorder %v1237, 0.0
        %vm1300 = vcmp.gt.f32.partialorder %v1239, 0.0
        %vm1301 = vcmp.gt.f32.partialorder %v1243, 0.0
        %vm1302 = vcmp.gt.f32.partialorder %v1245, 0.0
        %vm1303 = vcmp.gt.f32.partialorder %v1249, 0.0
        %vm1304 = vcmp.gt.f32.partialorder %v1251, 0.0
        %vm1305 = vcmp.gt.f32.partialorder %v1255, 0.0
        %vm1306 = vcmp.gt.f32.partialorder %v1257, 0.0
        %vm1307 = vcmp.gt.f32.partialorder %v1261, 0.0
        %vm1308 = vcmp.gt.f32.partialorder %v1263, 0.0
        %vm1309 = vcmp.gt.f32.partialorder %v1267, 0.0
        %vm1310 = vcmp.gt.f32.partialorder %v1269, 0.0
        %vm1311 = vcmp.gt.f32.partialorder %v1273, 0.0
        %vm1312 = vcmp.gt.f32.partialorder %v1275, 0.0
        %vm1313 = vcmp.gt.f32.partialorder %v1279, 0.0
        %vm1314 = vcmp.gt.f32.partialorder %v1281, 0.0
        %v1315 = vmul.f32 %v1189, 0.01
        %v1316 = vmul.f32 %v1191, 0.01
        %v1317 = vmul.f32 %v1195, 0.01
        %v1318 = vmul.f32 %v1197, 0.01
        %v1319 = vmul.f32 %v1201, 0.01
        %v1320 = vmul.f32 %v1203, 0.01
        %v1321 = vmul.f32 %v1207, 0.01
        %v1322 = vmul.f32 %v1209, 0.01
        %v1323 = vmul.f32 %v1213, 0.01
        %v1324 = vmul.f32 %v1215, 0.01
        %v1325 = vmul.f32 %v1219, 0.01
        %v1326 = vmul.f32 %v1221, 0.01
        %v1327 = vmul.f32 %v1225, 0.01
        %v1328 = vmul.f32 %v1227, 0.01
        %v1329 = vmul.f32 %v1231, 0.01
        %v1330 = vmul.f32 %v1233, 0.01
        %v1331 = vmul.f32 %v1237, 0.01
        %v1332 = vmul.f32 %v1239, 0.01
        %v1333 = vmul.f32 %v1243, 0.01
        %v1334 = vmul.f32 %v1245, 0.01
        %v1335 = vmul.f32 %v1249, 0.01
        %v1336 = vmul.f32 %v1251, 0.01
        %v1337 = vmul.f32 %v1255, 0.01
        %v1338 = vmul.f32 %v1257, 0.01
        %v1339 = vmul.f32 %v1261, 0.01
        %v1340 = vmul.f32 %v1263, 0.01
        %v1341 = vmul.f32 %v1267, 0.01
        %v1342 = vmul.f32 %v1269, 0.01
        %v1343 = vmul.f32 %v1273, 0.01
        %v1344 = vmul.f32 %v1275, 0.01
        %v1345 = vmul.f32 %v1279, 0.01
        %v1346 = vmul.f32 %v1281, 0.01
        %v1347 = vsel %vm1283, %v1189, %v1315
        %v1348 = vsel %vm1284, %v1191, %v1316
        %v1349 = vsel %vm1285, %v1195, %v1317
        %v1350 = vsel %vm1286, %v1197, %v1318
        %v1351 = vsel %vm1287, %v1201, %v1319
        %v1352 = vsel %vm1288, %v1203, %v1320
        %v1353 = vsel %vm1289, %v1207, %v1321
        %v1354 = vsel %vm1290, %v1209, %v1322
        %v1355 = vsel %vm1291, %v1213, %v1323
        %v1356 = vsel %vm1292, %v1215, %v1324
        %v1357 = vsel %vm1293, %v1219, %v1325
        %v1358 = vsel %vm1294, %v1221, %v1326
        %v1359 = vsel %vm1295, %v1225, %v1327
        %v1360 = vsel %vm1296, %v1227, %v1328
        %v1361 = vsel %vm1297, %v1231, %v1329
        %v1362 = vsel %vm1298, %v1233, %v1330
        %v1363 = vsel %vm1299, %v1237, %v1331
        %v1364 = vsel %vm1300, %v1239, %v1332
        %v1365 = vsel %vm1301, %v1243, %v1333
        %v1366 = vsel %vm1302, %v1245, %v1334
        %v1367 = vsel %vm1303, %v1249, %v1335
        %v1368 = vsel %vm1304, %v1251, %v1336
        %v1369 = vsel %vm1305, %v1255, %v1337
        %v1370 = vsel %vm1306, %v1257, %v1338
        %v1371 = vsel %vm1307, %v1261, %v1339
        %v1372 = vsel %vm1308, %v1263, %v1340
        %v1373 = vsel %vm1309, %v1267, %v1341
        %v1374 = vsel %vm1310, %v1269, %v1342
        %v1375 = vsel %vm1311, %v1273, %v1343
        %v1376 = vsel %vm1312, %v1275, %v1344
        %v1377 = vsel %vm1313, %v1279, %v1345
        %v1378 = vsel %vm1314, %v1281, %v1346
        %v1379 = vld [vmem:[%s5] sm:$0x1]
        %s1380 = sld [smem:[#allocation2]]
        %v1381 = vstv %s1380
        %1382 = vmatprep.subr.mxu0 %v1378
        %1383 = vmatpush1.msra.mxu0 %v1377
        %1384 = vmatprep.subr.mxu0 %v1376
        %1385 = vmatpush1.msra.mxu0 %v1375
        %1386 = vmatprep.subr.mxu0 %v1374
        %1387 = vmatpush1.msra.mxu0 %v1373
        %1388 = vmatprep.subr.mxu0 %v1372
        %1389 = vmatpush1.msra.mxu0 %v1371
        %1390 = vmatprep.subr.mxu0 %v1370
        %1391 = vmatpush1.msra.mxu0 %v1369
        %1392 = vmatprep.subr.mxu0 %v1368
        %1393 = vmatpush1.msra.mxu0 %v1367
        %1394 = vmatprep.subr.mxu0 %v1366
        %1395 = vmatpush1.msra.mxu0 %v1365
        %1396 = vmatprep.subr.mxu0 %v1364
        %1397 = vmatpush1.msra.mxu0 %v1363
        %1398 = vmatprep.subr.mxu0 %v1362
        %1399 = vmatpush1.msra.mxu0 %v1361
        %1400 = vmatprep.subr.mxu0 %v1360
        %1401 = vmatpush1.msra.mxu0 %v1359
        %1402 = vmatprep.subr.mxu0 %v1358
        %1403 = vmatpush1.msra.mxu0 %v1357
        %1404 = vmatprep.subr.mxu0 %v1356
        %1405 = vmatpush1.msra.mxu0 %v1355
        %1406 = vmatprep.subr.mxu0 %v1354
        %1407 = vmatpush1.msra.mxu0 %v1353
        %1408 = vmatprep.subr.mxu0 %v1352
        %1409 = vmatpush1.msra.mxu0 %v1351
        %1410 = vmatprep.subr.mxu0 %v1350
        %1411 = vmatpush1.msra.mxu0 %v1349
        %1412 = vmatprep.subr.mxu0 %v1348
        %1413 = vmatpush1.msra.mxu0 %v1347
        %1414 = vmatprep.subr.mxu0 0.0
        %1415 = vmatpush2.msra.mxu0 0.0
        %1416 = vmatprep.subr.mxu0 0.0
        %1417 = vmatpush2.msra.mxu0 0.0
        %1418 = vmatprep.subr.mxu0 0.0
        %1419 = vmatpush2.msra.mxu0 0.0
        %1420 = vmatprep.subr.mxu0 0.0
        %1421 = vmatpush2.msra.mxu0 0.0
        %1422 = vmatprep.subr.mxu0 0.0
        %1423 = vmatpush2.msra.mxu0 0.0
        %1424 = vmatprep.subr.mxu0 0.0
        %1425 = vmatpush2.msra.mxu0 0.0
        %1426 = vmatprep.subr.mxu0 0.0
        %1427 = vmatpush2.msra.mxu0 0.0
        %1428 = vmatprep.subr.mxu0 0.0
        %1429 = vmatpush2.msra.mxu0 0.0
        %1430 = vmatprep.subr.mxu0 0.0
        %1431 = vmatpush2.msra.mxu0 0.0
        %1432 = vmatprep.subr.mxu0 0.0
        %1433 = vmatpush2.msra.mxu0 0.0
        %1434 = vmatprep.subr.mxu0 0.0
        %1435 = vmatpush2.msra.mxu0 0.0
        %1436 = vmatprep.subr.mxu0 0.0
        %1437 = vmatpush2.msra.mxu0 0.0
        %1438 = vmatprep.subr.mxu0 0.0
        %1439 = vmatpush2.msra.mxu0 0.0
        %1440 = vmatprep.subr.mxu0 0.0
        %1441 = vmatpush2.msra.mxu0 0.0
        %1442 = vmatprep.subr.mxu0 0.0
        %1443 = vmatpush2.msra.mxu0 0.0
        %1444 = vmatprep.subr.mxu0 0.0
        %1445 = vmatpush2.msra.mxu0 0.0
        %1446 = vmatprep.mubr.f32.mxu0 0.0
        %1447 = vmatmul.mubr.f32.gmra.mxu0 %v1379
        %v1448 = vpop.f32.mrf.mxu0
        %v1449 = vadd.f32 %v1381, %v1448
        %v1450 = vpop.f32.mrf.mxu0
        %v1451 = vadd.f32 %v1381, %v1450
        %1452 = vdwg.mxu0
        %v1455 = vcombine.low %v1449, %v1451
        %v1457 = vunpack.c.l.s4 1966171168
        %v1458 = vunpack.c.0.s8 %v1457
        %v1459 = vlaneseq
        %v1460 = vshrl.u32 %v1459, 7
        %v1461 = vsub.s32 %v1458, %v1460
        %v1462 = vrot.slane %v1455, %v1461
        %v1464 = vunpack.c.l.s4 1966171168
        %v1465 = vunpack.c.0.s8 %v1464
        %v1466 = vlaneseq
        %v1467 = vshrl.u32 %v1466, 7
        %v1468 = vsub.s32 %v1465, %v1467
        %v1469 = vrot.slane %v1462, %v1468
        %v1471 = vlaneseq
        %vm1472 = vcmp.ge.s32.totalorder %v1471, 0
        %vm1473 = vcmp.lt.s32.totalorder %v1471, 256
        %vm1474 = vmand %vm1472, %vm1473
        %1475 = vst.msk [vmem:[%s271] sm:$0x3] %vm1474, %v1469
        %s1476 = sand.u32 %s182, 1
        %s1477 = scalar_lea.sflag [#allocation4], %s1476
        %s1478 = sand.u32 %s182, 1
        %s1479 = smul.addr %s1478, 2
        %s1480 = scalar_lea.vmem [#allocation3], %s1479
        // Predicated region
        $region49: #{tpu_custom_call.1} parent=47 // pred_check
          %p1481 = pneg %p192
        $region50: #{tpu_custom_call.1} parent=47 // pred_check_branch
          %1483 = sbr.rel (%p1481) target = $region52
        $region51: #{tpu_custom_call.1} parent=47 // pred_region
          %s1484 = smul.u32 2, %s22
          %s1486 = ssub.s32 32, 32
          %1487 = vsyncadd %s1477, %s1486
          %s1488 = smul.addr %s1484, 16
          %s1489 = scalar_lea.hbm %s7, %s1488
          %s1491 = sshll.u32 %s1480, 4
          %s1492 = int_to_ptr.vmem [resolvable:$true] %s1491
          %1494 = dma.vmem_to_hbm [thread:$0]  %s1492, 32, %s1489, %s1477
        $region52: #{tpu_custom_call.1} parent=47 // pred_fallthru
          _
      $region48: #{tpu_custom_call.1} parent=5 // pred_fallthru
        _
      %p1495 = scmp.le.s32.totalorder 2, %s17
      // Predicated region
      $region53: #{tpu_custom_call.1} parent=5 // pred_check
        %p1496 = pneg %p1495
      $region54: #{tpu_custom_call.1} parent=5 // pred_check_branch
        %1498 = sbr.rel (%p1496) target = $region56
      $region55: #{tpu_custom_call.1} parent=5 // pred_region
        %s1499 = ssub.s32 %s17, 2
        // Predicated region
        $region57: #{tpu_custom_call.1} parent=55 // pred_check
          %p1500 = pneg %p198
        $region58: #{tpu_custom_call.1} parent=55 // pred_check_branch
          %1502 = sbr.rel (%p1500) target = $region60
        $region59: #{tpu_custom_call.1} parent=55 // pred_region
          %s1503 = sand.u32 %s183, 1
          %s1504 = scalar_lea.sflag [#allocation4], %s1503
          %s1505 = sand.u32 %s183, 1
          %s1506 = smul.addr %s1505, 2
          %s1507 = scalar_lea.vmem [#allocation3], %s1506
          %1508 = dma.done %s1504, 32
        $region60: #{tpu_custom_call.1} parent=55 // pred_fallthru
          _
      $region56: #{tpu_custom_call.1} parent=5 // pred_fallthru
        _
    $region6: #{tpu_custom_call.1} parent=1 // loop_footer
      %s21 = sadd.s32 1, %s17
    $region7: #{tpu_custom_call.1} parent=1 // loop_footer_branch
      %16 = sbr.rel target = $region3
    $region8: #{tpu_custom_call.1} parent=1 // loop_exit
      _
    %1509 = vsyncpa [#allocation4], 1
    %s1510 = scalar_lea.sflag [#allocation4], 1
    %1511 = vsyncpa %s1510, 1

</llo_original>
